<compile_context>
chip_gen: v7x
topology: tpu7x:2x2x1
jax: 0.10.0
libtpu: 0.0.40
codegen_flags: <defaults>
</compile_context>

<pallas_src>
import jax
import jax.numpy as jnp
from jax.experimental import pallas as pl
from jax.experimental.pallas import tpu as pltpu


def _round_up(x, m):
    return ((x + m - 1) // m) * m


def _random_intensity_kernel(x_ref, f_ref, o_ref):
    # x_ref: (TR, LANE) VMEM, f_ref: (TR, 1) VMEM per-row factor, o_ref: (TR, LANE).
    # Pure streaming multiply -> HBM-bandwidth bound; VPU broadcast along lanes.
    o_ref[...] = (x_ref[...] * f_ref[...]).astype(o_ref.dtype)


def random_intensity(x, key, scale, *, block_rows=1024):
    """x: (B, C, H, W). Returns x * (1 + scale * clamp(randn(B), -2, 2)) per sample."""
    B, C, H, W = x.shape
    N = C * H * W

    # Glue (tiny): per-sample gaussian noise, clamped, folded into one factor.
    noise = jnp.clip(jax.random.normal(key, (B,), dtype=jnp.float32), -2.0, 2.0)
    factor = (1.0 + scale * noise).astype(jnp.float32)

    # Lane-dense layout: flatten each sample into rows of LANE elements.
    # Prefer LANE=512 for unmasked, wide stores; fall back to keep padding small.
    if N % 512 == 0:
        lane = 512
    elif N % 256 == 0:
        lane = 256
    else:
        lane = 128
    rows_per_sample = pl.cdiv(N, lane)
    per_sample_padded = rows_per_sample * lane

    x_flat = x.reshape(B, N)
    if per_sample_padded != N:
        x_flat = jnp.pad(x_flat, ((0, 0), (0, per_sample_padded - N)))
    x_rows = x_flat.reshape(B * rows_per_sample, lane)

    # Per-row factor: every row belongs to exactly one sample.
    f_rows = jnp.broadcast_to(factor[:, None], (B, rows_per_sample))
    f_rows = f_rows.reshape(B * rows_per_sample, 1)

    total_rows = B * rows_per_sample

    # Row tile: multiple of 8 sublanes; 1024 x 512 x 4B = 2 MiB per f32 block,
    # so (in + out) x 2 double-buffers = 8 MiB < 16 MiB default scoped VMEM on
    # every generation (v5e / v6e / v7x) -- no vmem_limit_bytes override needed.
    tr = min(block_rows, _round_up(total_rows, 8))
    rows_padded = _round_up(total_rows, tr)
    if rows_padded != total_rows:
        pad = rows_padded - total_rows
        x_rows = jnp.pad(x_rows, ((0, pad), (0, 0)))
        f_rows = jnp.pad(f_rows, ((0, pad), (0, 0)))

    n_tiles = rows_padded // tr
    itemsize = x.dtype.itemsize
    cost = pl.CostEstimate(
        flops=rows_padded * lane,
        transcendentals=0,
        bytes_accessed=2 * rows_padded * lane * itemsize + rows_padded * 4,
    )

    out_rows = pl.pallas_call(
        _random_intensity_kernel,
        out_shape=jax.ShapeDtypeStruct((rows_padded, lane), x.dtype),
        grid=(n_tiles,),
        in_specs=[
            pl.BlockSpec((tr, lane), lambda i: (i, 0)),   # x rows (lane-dense)
            pl.BlockSpec((tr, 1), lambda i: (i, 0)),      # per-row factor
        ],
        out_specs=pl.BlockSpec((tr, lane), lambda i: (i, 0)),
        compiler_params=pltpu.CompilerParams(
            dimension_semantics=("parallel",),
        ),
        cost_estimate=cost,
    )(x_rows, f_rows)

    out = out_rows[:total_rows].reshape(B, per_sample_padded)[:, :N]
    return out.reshape(B, C, H, W)


if __name__ == "__main__":
    key = jax.random.PRNGKey(0)
    k_x, k_noise = jax.random.split(key)

    B, C, H, W = 2, 4, 16, 16
    scale = 0.1

    x = jax.random.normal(k_x, (B, C, H, W), dtype=jnp.float32)

    out = jax.block_until_ready(random_intensity(x, k_noise, scale))

    # Reference check (pure JAX, same RNG / same factor construction).
    noise_ref = jnp.clip(jax.random.normal(k_noise, (B,), dtype=jnp.float32), -2.0, 2.0)
    ref = x * (1.0 + scale * noise_ref)[:, None, None, None]
    assert out.shape == (B, C, H, W)
    assert jnp.allclose(out, ref, atol=1e-6), "mismatch vs reference"

    print("KERNEL_OK")
</pallas_src>

<mosaic_0001>
module attributes {stable_mosaic.version = 11 : i64} {
  func.func @_random_intensity_kernel(%arg0: i32, %arg1: memref<8x512xf32, #tpu.memory_space<vmem>>, %arg2: memref<8x1xf32, #tpu.memory_space<vmem>>, %arg3: memref<8x512xf32, #tpu.memory_space<vmem>>) attributes {dimension_semantics = [#tpu.dimension_semantics<parallel>], iteration_bounds = array<i64: 1>, scalar_prefetch = 0 : i64, scratch_operands = 0 : i64, tpu.core_type = #tpu.core_type<tc>, window_params = [{transform_indices = @transform_0, window_bounds = array<i64: 8, 512>}, {transform_indices = @transform_1, window_bounds = array<i64: 8, 1>}, {transform_indices = @transform_2, window_bounds = array<i64: 8, 512>}]} {
    %c0 = arith.constant 0 : index
    %c0_0 = arith.constant 0 : index
    %0 = vector.load %arg1[%c0, %c0_0] : memref<8x512xf32, #tpu.memory_space<vmem>>, vector<8x512xf32>
    %c0_1 = arith.constant 0 : index
    %c0_2 = arith.constant 0 : index
    %1 = vector.load %arg2[%c0_1, %c0_2] : memref<8x1xf32, #tpu.memory_space<vmem>>, vector<8x1xf32>
    %2 = vector.broadcast %1 : vector<8x1xf32> to vector<8x512xf32>
    %3 = arith.mulf %0, %2 : vector<8x512xf32>
    %c0_3 = arith.constant 0 : index
    %c0_4 = arith.constant 0 : index
    %4 = vector.load %arg3[%c0_3, %c0_4] : memref<8x512xf32, #tpu.memory_space<vmem>>, vector<8x512xf32>
    tpu.vector_store %arg3[%c0_3, %c0_4], %3 {strides = array<i32>} : memref<8x512xf32, #tpu.memory_space<vmem>>, vector<8x512xf32>,
    return
  }
  func.func @transform_0(%arg0: i32) -> (i32, i32) {
    %c0_i32 = arith.constant 0 : i32
    %c0_i32_0 = arith.constant 0 : i32
    return %arg0, %c0_i32 : i32, i32
  }
  func.func @transform_1(%arg0: i32) -> (i32, i32) {
    %c0_i32 = arith.constant 0 : i32
    %c0_i32_0 = arith.constant 0 : i32
    return %arg0, %c0_i32 : i32, i32
  }
  func.func @transform_2(%arg0: i32) -> (i32, i32) {
    %c0_i32 = arith.constant 0 : i32
    %c0_i32_0 = arith.constant 0 : i32
    return %arg0, %c0_i32 : i32, i32
  }
}

</mosaic_0001>

<llo_original>
// kernel: tpu_custom_call.1
$region0: #{tpu_custom_call.1}
  #allocation0 [shape = 'u32[]', space=smem, size = 0x4, offset = 0x4, fixed_abs, tag = 'smem constant byte address 0x4 - core index']
  #allocation1 [shape = 'u32[144,128]{1,0:T(1,128)}', space=vmem, size = 0x12000, scoped, tag = 'internal scratch']
  %s0 = inlined_call_operand.hbm [shape: f32[8,512], index: 0, kind: input, shape index: {}]
  %s1 = inlined_call_operand.vmem [shape: f32[8,1], index: 1, kind: input, shape index: {}]
  %s2 = inlined_call_operand.hbm [shape: f32[8,512], index: 2, kind: output, shape index: {}]
  %s3 = sld [smem:[#allocation0]]
  $region22: #{tpu_custom_call.1} parent=0
    _
  %s5 = ssub.s32 1, %s3
  %s6 = scalar_select 0, %s5, %s3
  $region1: #{tpu_custom_call.1} parent=0
    #allocation2 [shape = 'u8[16384]{0}', space=vmem, size = 0x4000, scoped, tag = 'input window, operand 0, single buffered']
    #allocation3 [shape = 's32[1]{0}', space=sflag, size = 0x4, scoped, tag = 'scoped memory for tpu_custom_call.1']
    #allocation4 [shape = 's32[1]{0}', space=sflag, size = 0x4, scoped, tag = 'scoped memory for tpu_custom_call.1']
    #allocation5 [shape = 'u8[16384]{0}', space=vmem, size = 0x4000, scoped, tag = 'output window, operand 0, single buffered']
    %7 = vsyncpa [#allocation3], 0
    %8 = vsyncpa [#allocation4], 0
    // Predicated region
    $region2: #{tpu_custom_call.1} parent=1 // pred_check
      _
    $region3: #{tpu_custom_call.1} parent=1 // pred_check_branch
      %10 = sbr.rel (0) target = $region5
    $region4: #{tpu_custom_call.1} parent=1 // pred_region
      %s12 = ssub.s32 512, 512
      %13 = vsyncadd [#allocation3], %s12
      %s15 = sshll.u32 [#allocation2], 4
      %s16 = int_to_ptr.vmem [resolvable:$true] %s15
      %18 = dma.hbm_to_vmem [thread:$0]  %s0, 512, %s16, [#allocation3]
    $region5: #{tpu_custom_call.1} parent=1 // pred_fallthru
      _
    // Predicated region
    $region6: #{tpu_custom_call.1} parent=1 // pred_check
      _
    $region7: #{tpu_custom_call.1} parent=1 // pred_check_branch
      %20 = sbr.rel (0) target = $region9
    $region8: #{tpu_custom_call.1} parent=1 // pred_region
      _
    $region9: #{tpu_custom_call.1} parent=1 // pred_fallthru
      _
    // Predicated region
    $region10: #{tpu_custom_call.1} parent=1 // pred_check
      _
    $region11: #{tpu_custom_call.1} parent=1 // pred_check_branch
      %22 = sbr.rel (0) target = $region13
    $region12: #{tpu_custom_call.1} parent=1 // pred_region
      %23 = dma.done [#allocation3], 512
    $region13: #{tpu_custom_call.1} parent=1 // pred_fallthru
      _
    %v24 = vld [vmem:[#allocation2] sm:$0xff]
    %v25 = vld [vmem:[#allocation2 + $0x8] sm:$0xff]
    %v26 = vld [vmem:[#allocation2 + $0x10] sm:$0xff]
    %v27 = vld [vmem:[#allocation2 + $0x18] sm:$0xff]
    %v28 = vld [vmem:[%s1] sm:$0xff]
    %30 = vset.pattern.permute.xlu0 0
    %31 = vperm.xlu0 %30, %v28
    %v32 = vpop.permute.xlu0 %31
    %v34 = vmul.f32 %v24, %v32
    %v35 = vmul.f32 %v25, %v32
    %v36 = vmul.f32 %v26, %v32
    %v37 = vmul.f32 %v27, %v32
    %38 = vst [vmem:[#allocation5] sm:$0xff] %v34
    %39 = vst [vmem:[#allocation5 + $0x8] sm:$0xff] %v35
    %40 = vst [vmem:[#allocation5 + $0x10] sm:$0xff] %v36
    %41 = vst [vmem:[#allocation5 + $0x18] sm:$0xff] %v37
    // Predicated region
    $region14: #{tpu_custom_call.1} parent=1 // pred_check
      _
    $region15: #{tpu_custom_call.1} parent=1 // pred_check_branch
      %43 = sbr.rel (0) target = $region17
    $region16: #{tpu_custom_call.1} parent=1 // pred_region
      %s45 = ssub.s32 512, 512
      %46 = vsyncadd [#allocation4], %s45
      %s48 = sshll.u32 [#allocation5], 4
      %s49 = int_to_ptr.vmem [resolvable:$true] %s48
      %51 = dma.vmem_to_hbm [thread:$0]  %s49, 512, %s2, [#allocation4]
    $region17: #{tpu_custom_call.1} parent=1 // pred_fallthru
      _
    // Predicated region
    $region18: #{tpu_custom_call.1} parent=1 // pred_check
      _
    $region19: #{tpu_custom_call.1} parent=1 // pred_check_branch
      %53 = sbr.rel (0) target = $region21
    $region20: #{tpu_custom_call.1} parent=1 // pred_region
      %54 = dma.done [#allocation4], 512
    $region21: #{tpu_custom_call.1} parent=1 // pred_fallthru
      _
    %55 = vsyncpa [#allocation3], 1
    %56 = vsyncpa [#allocation4], 1

</llo_original>
